<compile_context>
chip_gen: v5e
topology: v5e:2x2
jax: 0.10.0
libtpu: 0.0.40
codegen_flags: <defaults>
</compile_context>

<pallas_src>
import functools

import jax
import jax.numpy as jnp
from jax.experimental import pallas as pl
from jax.experimental.pallas import tpu as pltpu

LANE = 128
SUBLANE = 8


def _round_up(n, m):
    return ((n + m - 1) // m) * m


# ----------------------------------------------------------------------------
# Fused kernel: all hidden layers + fc + sigmoid in one body.
# ----------------------------------------------------------------------------
def _make_fused_kernel(num_hidden):
    n_lin = num_hidden + 1  # hidden layers + final fc

    def kernel(*refs):
        # refs = [x, W0, b0, ..., W_{L-1}, b_{L-1}, W_fc, b_fc,
        #         act_0, ..., act_{L-1}, logits, probs]
        x_ref = refs[0]
        w_refs = refs[1:1 + 2 * n_lin:2]
        b_refs = refs[2:1 + 2 * n_lin:2]
        out_refs = refs[1 + 2 * n_lin:]

        h = x_ref[...]
        # Hidden layers: y = relu(h @ W + b); activation emitted, h stays on-chip.
        for i in range(num_hidden):
            y = jnp.dot(h, w_refs[i][...], preferred_element_type=jnp.float32)
            y = jnp.maximum(y + b_refs[i][...], 0.0)
            out_refs[i][...] = y.astype(out_refs[i].dtype)
            h = y
        # Final fc + sigmoid (sigmoid's exp rides the otherwise-idle EUP slot).
        y = jnp.dot(h, w_refs[num_hidden][...], preferred_element_type=jnp.float32)
        y = y + b_refs[num_hidden][...]
        out_refs[num_hidden][...] = y.astype(out_refs[num_hidden].dtype)        # logits
        out_refs[num_hidden + 1][...] = jax.nn.sigmoid(y).astype(
            out_refs[num_hidden + 1].dtype)                                     # probs

    return kernel


# ----------------------------------------------------------------------------
# Parameter padding: make every feature dim a multiple of 128 (lane-dense).
# ----------------------------------------------------------------------------
def _prepare_padded_params(params):
    """Zero-pad weights/biases so every layer output dim is a multiple of 128.

    Returns (padded_linears, real_out_dims) where padded_linears[i] is
    (W_padded (d_in_pad, d_out_pad) f32, b_padded (1, d_out_pad) f32).
    Zero padding is exact: padded activation lanes are relu(0 + 0) = 0 and the
    corresponding rows of the next weight matrix are zero, so real outputs match.
    """
    all_linears = list(params["layers"]) + [params["fc"]]
    padded = []
    real_out_dims = []
    prev_out_pad = all_linears[0][0].shape[0]  # first input dim stays unpadded
    for (w, b) in all_linears:
        d_in, d_out = w.shape
        d_out_pad = _round_up(d_out, LANE)
        w_p = jnp.zeros((prev_out_pad, d_out_pad), jnp.float32).at[:d_in, :d_out].set(w)
        b_p = jnp.zeros((1, d_out_pad), jnp.float32).at[0, :d_out].set(b)
        padded.append((w_p, b_p))
        real_out_dims.append(d_out)
        prev_out_pad = d_out_pad
    return padded, real_out_dims


# ----------------------------------------------------------------------------
# Forward pass wrapper.
# ----------------------------------------------------------------------------
def hooked_mlp_forward(x, params, *, max_tile_b=256):
    """Mirrors HookedMLP.forward: returns (sigmoid(fc(...)), activations dict)."""
    num_hidden = len(params["layers"])
    padded, real_out_dims = _prepare_padded_params(params)

    B, in_dim = x.shape
    # Pick a batch tile: single tile for small batches, 256-row tiles for large
    # batches (pipelined auto-double-buffering, megacore-shardable).
    tile_b = _round_up(B, SUBLANE) if B <= max_tile_b else max_tile_b
    B_pad = _round_up(B, tile_b)
    if B_pad != B:
        x = jnp.zeros((B_pad, in_dim), x.dtype).at[:B, :].set(x)
    n_tiles = B_pad // tile_b

    # Inputs: x tiled over batch; weights/biases whole-array, index_map constant
    # so they stay resident in VMEM across grid steps.
    flat_inputs = [x]
    in_specs = [pl.BlockSpec((tile_b, in_dim), lambda i: (i, 0))]
    for w_p, b_p in padded:
        flat_inputs += [w_p, b_p]
        in_specs.append(pl.BlockSpec(w_p.shape, lambda i: (0, 0)))
        in_specs.append(pl.BlockSpec(b_p.shape, lambda i: (0, 0)))

    padded_out_dims = [w_p.shape[1] for w_p, _ in padded]
    out_shapes = []
    out_specs = []
    # num_hidden activations + logits + probs, all lane-dense (128-padded).
    for d_out_pad in padded_out_dims[:num_hidden]:
        out_shapes.append(jax.ShapeDtypeStruct((B_pad, d_out_pad), jnp.float32))
        out_specs.append(pl.BlockSpec((tile_b, d_out_pad), lambda i: (i, 0)))
    d_fc_pad = padded_out_dims[-1]
    for _ in range(2):  # logits, probs
        out_shapes.append(jax.ShapeDtypeStruct((B_pad, d_fc_pad), jnp.float32))
        out_specs.append(pl.BlockSpec((tile_b, d_fc_pad), lambda i: (i, 0)))

    outs = pl.pallas_call(
        _make_fused_kernel(num_hidden),
        out_shape=tuple(out_shapes),
        grid=(n_tiles,),
        in_specs=in_specs,
        out_specs=tuple(out_specs),
        compiler_params=pltpu.CompilerParams(
            dimension_semantics=("parallel",)),
    )(*flat_inputs)

    # Strip padding in the wrapper (cheap XLA slices).
    activations = {}
    for i in range(num_hidden):
        activations[f"layer_{i}"] = outs[i][:B, :real_out_dims[i]]
    logits = outs[num_hidden][:B, :real_out_dims[-1]]
    probs = outs[num_hidden + 1][:B, :real_out_dims[-1]]
    activations["output"] = logits
    return probs, activations


# ----------------------------------------------------------------------------
# Deterministic parameter construction (synthetic; no checkpoint load)
# ----------------------------------------------------------------------------
def init_params(key, in_dim, hidden_dims, out_dim):
    params = {"layers": [], "fc": None}
    dims = [in_dim] + list(hidden_dims)
    for d_in, d_out in zip(dims[:-1], dims[1:]):
        key, kw, kb = jax.random.split(key, 3)
        w = jax.random.normal(kw, (d_in, d_out), jnp.float32) * (1.0 / jnp.sqrt(d_in))
        b = jax.random.normal(kb, (d_out,), jnp.float32) * 0.01
        params["layers"].append((w, b))
    key, kw, kb = jax.random.split(key, 3)
    w = jax.random.normal(kw, (dims[-1], out_dim), jnp.float32) * (1.0 / jnp.sqrt(dims[-1]))
    b = jax.random.normal(kb, (out_dim,), jnp.float32) * 0.01
    params["fc"] = (w, b)
    return params


# ----------------------------------------------------------------------------
# Reference (plain JAX) for sanity checking
# ----------------------------------------------------------------------------
def reference_forward(x, params):
    acts = {}
    for i, (w, b) in enumerate(params["layers"]):
        x = jnp.maximum(x @ w + b, 0.0)
        acts[f"layer_{i}"] = x
    logits = x @ params["fc"][0] + params["fc"][1]
    acts["output"] = logits
    return jax.nn.sigmoid(logits), acts


def _check(x, params):
    probs, acts = hooked_mlp_forward(x, params)
    probs = jax.block_until_ready(probs)
    for v in acts.values():
        jax.block_until_ready(v)
    ref_probs, ref_acts = reference_forward(x, params)
    assert jnp.allclose(probs, ref_probs, atol=1e-5, rtol=1e-5)
    for name in ref_acts:
        assert jnp.allclose(acts[name], ref_acts[name], atol=1e-5, rtol=1e-5), name


if __name__ == "__main__":
    key = jax.random.PRNGKey(0)
    k_x, k_x2, k_p = jax.random.split(key, 3)

    in_dim, hidden_dims, out_dim = 32, (64, 64), 4
    params = init_params(k_p, in_dim, hidden_dims, out_dim)

    # Small batch: single grid step, everything resident in VMEM.
    x = jax.random.normal(k_x, (8, in_dim), jnp.float32)
    _check(x, params)

    # Non-aligned, multi-tile batch: exercises batch padding + parallel grid.
    x2 = jax.random.normal(k_x2, (260, in_dim), jnp.float32)
    _check(x2, params)

    print("KERNEL_OK")
</pallas_src>

<mosaic_0001>
module attributes {stable_mosaic.version = 11 : i64} {
  func.func @kernel(%arg0: i32, %arg1: memref<8x32xf32, #tpu.memory_space<vmem>>, %arg2: memref<32x128xf32, #tpu.memory_space<vmem>>, %arg3: memref<1x128xf32, #tpu.memory_space<vmem>>, %arg4: memref<128x128xf32, #tpu.memory_space<vmem>>, %arg5: memref<1x128xf32, #tpu.memory_space<vmem>>, %arg6: memref<128x128xf32, #tpu.memory_space<vmem>>, %arg7: memref<1x128xf32, #tpu.memory_space<vmem>>, %arg8: memref<8x128xf32, #tpu.memory_space<vmem>>, %arg9: memref<8x128xf32, #tpu.memory_space<vmem>>, %arg10: memref<8x128xf32, #tpu.memory_space<vmem>>, %arg11: memref<8x128xf32, #tpu.memory_space<vmem>>) attributes {dimension_semantics = [#tpu.dimension_semantics<parallel>], iteration_bounds = array<i64: 1>, scalar_prefetch = 0 : i64, scratch_operands = 0 : i64, tpu.core_type = #tpu.core_type<tc>, window_params = [{transform_indices = @transform_0, window_bounds = array<i64: 8, 32>}, {pipeline_mode = #tpu.pipeline_mode<synchronous>, transform_indices = @transform_1, window_bounds = array<i64: 32, 128>}, {pipeline_mode = #tpu.pipeline_mode<synchronous>, transform_indices = @transform_2, window_bounds = array<i64: 1, 128>}, {pipeline_mode = #tpu.pipeline_mode<synchronous>, transform_indices = @transform_3, window_bounds = array<i64: 128, 128>}, {pipeline_mode = #tpu.pipeline_mode<synchronous>, transform_indices = @transform_4, window_bounds = array<i64: 1, 128>}, {pipeline_mode = #tpu.pipeline_mode<synchronous>, transform_indices = @transform_5, window_bounds = array<i64: 128, 128>}, {pipeline_mode = #tpu.pipeline_mode<synchronous>, transform_indices = @transform_6, window_bounds = array<i64: 1, 128>}, {transform_indices = @transform_7, window_bounds = array<i64: 8, 128>}, {transform_indices = @transform_8, window_bounds = array<i64: 8, 128>}, {transform_indices = @transform_9, window_bounds = array<i64: 8, 128>}, {transform_indices = @transform_10, window_bounds = array<i64: 8, 128>}]} {
    %c0 = arith.constant 0 : index
    %c0_0 = arith.constant 0 : index
    %0 = vector.load %arg1[%c0, %c0_0] : memref<8x32xf32, #tpu.memory_space<vmem>>, vector<8x32xf32>
    %c0_1 = arith.constant 0 : index
    %c0_2 = arith.constant 0 : index
    %1 = vector.load %arg2[%c0_1, %c0_2] : memref<32x128xf32, #tpu.memory_space<vmem>>, vector<32x128xf32>
    %cst = arith.constant dense<0.000000e+00> : vector<8x128xf32>
    %2 = tpu.matmul %0, %1, %cst {dimension_numbers = #tpu.dot_dimension_numbers<[1], [0], [0], [1], [0, 0, 1, 1], [], []>} : vector<8x32xf32>, vector<32x128xf32>, vector<8x128xf32> -> vector<8x128xf32>
    %c0_3 = arith.constant 0 : index
    %c0_4 = arith.constant 0 : index
    %3 = vector.load %arg3[%c0_3, %c0_4] : memref<1x128xf32, #tpu.memory_space<vmem>>, vector<1x128xf32>
    %4 = vector.broadcast %3 : vector<1x128xf32> to vector<8x128xf32>
    %5 = arith.addf %2, %4 : vector<8x128xf32>
    %cst_5 = arith.constant 0.000000e+00 : f32
    %6 = vector.broadcast %cst_5 : f32 to vector<8x128xf32>
    %7 = arith.maximumf %5, %6 : vector<8x128xf32>
    %c0_6 = arith.constant 0 : index
    %c0_7 = arith.constant 0 : index
    %8 = vector.load %arg8[%c0_6, %c0_7] : memref<8x128xf32, #tpu.memory_space<vmem>>, vector<8x128xf32>
    tpu.vector_store %arg8[%c0_6, %c0_7], %7 {strides = array<i32>} : memref<8x128xf32, #tpu.memory_space<vmem>>, vector<8x128xf32>,
    %c0_8 = arith.constant 0 : index
    %c0_9 = arith.constant 0 : index
    %9 = vector.load %arg4[%c0_8, %c0_9] : memref<128x128xf32, #tpu.memory_space<vmem>>, vector<128x128xf32>
    %cst_10 = arith.constant dense<0.000000e+00> : vector<8x128xf32>
    %10 = tpu.matmul %7, %9, %cst_10 {dimension_numbers = #tpu.dot_dimension_numbers<[1], [0], [0], [1], [0, 0, 1, 1], [], []>} : vector<8x128xf32>, vector<128x128xf32>, vector<8x128xf32> -> vector<8x128xf32>
    %c0_11 = arith.constant 0 : index
    %c0_12 = arith.constant 0 : index
    %11 = vector.load %arg5[%c0_11, %c0_12] : memref<1x128xf32, #tpu.memory_space<vmem>>, vector<1x128xf32>
    %12 = vector.broadcast %11 : vector<1x128xf32> to vector<8x128xf32>
    %13 = arith.addf %10, %12 : vector<8x128xf32>
    %cst_13 = arith.constant 0.000000e+00 : f32
    %14 = vector.broadcast %cst_13 : f32 to vector<8x128xf32>
    %15 = arith.maximumf %13, %14 : vector<8x128xf32>
    %c0_14 = arith.constant 0 : index
    %c0_15 = arith.constant 0 : index
    %16 = vector.load %arg9[%c0_14, %c0_15] : memref<8x128xf32, #tpu.memory_space<vmem>>, vector<8x128xf32>
    tpu.vector_store %arg9[%c0_14, %c0_15], %15 {strides = array<i32>} : memref<8x128xf32, #tpu.memory_space<vmem>>, vector<8x128xf32>,
    %c0_16 = arith.constant 0 : index
    %c0_17 = arith.constant 0 : index
    %17 = vector.load %arg6[%c0_16, %c0_17] : memref<128x128xf32, #tpu.memory_space<vmem>>, vector<128x128xf32>
    %cst_18 = arith.constant dense<0.000000e+00> : vector<8x128xf32>
    %18 = tpu.matmul %15, %17, %cst_18 {dimension_numbers = #tpu.dot_dimension_numbers<[1], [0], [0], [1], [0, 0, 1, 1], [], []>} : vector<8x128xf32>, vector<128x128xf32>, vector<8x128xf32> -> vector<8x128xf32>
    %c0_19 = arith.constant 0 : index
    %c0_20 = arith.constant 0 : index
    %19 = vector.load %arg7[%c0_19, %c0_20] : memref<1x128xf32, #tpu.memory_space<vmem>>, vector<1x128xf32>
    %20 = vector.broadcast %19 : vector<1x128xf32> to vector<8x128xf32>
    %21 = arith.addf %18, %20 : vector<8x128xf32>
    %c0_21 = arith.constant 0 : index
    %c0_22 = arith.constant 0 : index
    %22 = vector.load %arg10[%c0_21, %c0_22] : memref<8x128xf32, #tpu.memory_space<vmem>>, vector<8x128xf32>
    tpu.vector_store %arg10[%c0_21, %c0_22], %21 {strides = array<i32>} : memref<8x128xf32, #tpu.memory_space<vmem>>, vector<8x128xf32>,
    %23 = arith.negf %21 : vector<8x128xf32>
    %24 = math.exp %23 : vector<8x128xf32>
    %cst_23 = arith.constant 1.000000e+00 : f32
    %25 = vector.broadcast %cst_23 : f32 to vector<8x128xf32>
    %26 = arith.addf %25, %24 : vector<8x128xf32>
    %27 = arith.divf %25, %26 : vector<8x128xf32>
    %c0_24 = arith.constant 0 : index
    %c0_25 = arith.constant 0 : index
    %28 = vector.load %arg11[%c0_24, %c0_25] : memref<8x128xf32, #tpu.memory_space<vmem>>, vector<8x128xf32>
    tpu.vector_store %arg11[%c0_24, %c0_25], %27 {strides = array<i32>} : memref<8x128xf32, #tpu.memory_space<vmem>>, vector<8x128xf32>,
    return
  }
  func.func @transform_0(%arg0: i32) -> (i32, i32) {
    %c0_i32 = arith.constant 0 : i32
    %c0_i32_0 = arith.constant 0 : i32
    return %arg0, %c0_i32 : i32, i32
  }
  func.func @transform_1(%arg0: i32) -> (i32, i32) {
    %c0_i32 = arith.constant 0 : i32
    %c0_i32_0 = arith.constant 0 : i32
    %c0_i32_1 = arith.constant 0 : i32
    return %c0_i32, %c0_i32_0 : i32, i32
  }
  func.func @transform_2(%arg0: i32) -> (i32, i32) {
    %c0_i32 = arith.constant 0 : i32
    %c0_i32_0 = arith.constant 0 : i32
    %c0_i32_1 = arith.constant 0 : i32
    return %c0_i32, %c0_i32_0 : i32, i32
  }
  func.func @transform_3(%arg0: i32) -> (i32, i32) {
    %c0_i32 = arith.constant 0 : i32
    %c0_i32_0 = arith.constant 0 : i32
    %c0_i32_1 = arith.constant 0 : i32
    return %c0_i32, %c0_i32_0 : i32, i32
  }
  func.func @transform_4(%arg0: i32) -> (i32, i32) {
    %c0_i32 = arith.constant 0 : i32
    %c0_i32_0 = arith.constant 0 : i32
    %c0_i32_1 = arith.constant 0 : i32
    return %c0_i32, %c0_i32_0 : i32, i32
  }
  func.func @transform_5(%arg0: i32) -> (i32, i32) {
    %c0_i32 = arith.constant 0 : i32
    %c0_i32_0 = arith.constant 0 : i32
    %c0_i32_1 = arith.constant 0 : i32
    return %c0_i32, %c0_i32_0 : i32, i32
  }
  func.func @transform_6(%arg0: i32) -> (i32, i32) {
    %c0_i32 = arith.constant 0 : i32
    %c0_i32_0 = arith.constant 0 : i32
    %c0_i32_1 = arith.constant 0 : i32
    return %c0_i32, %c0_i32_0 : i32, i32
  }
  func.func @transform_7(%arg0: i32) -> (i32, i32) {
    %c0_i32 = arith.constant 0 : i32
    %c0_i32_0 = arith.constant 0 : i32
    return %arg0, %c0_i32 : i32, i32
  }
  func.func @transform_8(%arg0: i32) -> (i32, i32) {
    %c0_i32 = arith.constant 0 : i32
    %c0_i32_0 = arith.constant 0 : i32
    return %arg0, %c0_i32 : i32, i32
  }
  func.func @transform_9(%arg0: i32) -> (i32, i32) {
    %c0_i32 = arith.constant 0 : i32
    %c0_i32_0 = arith.constant 0 : i32
    return %arg0, %c0_i32 : i32, i32
  }
  func.func @transform_10(%arg0: i32) -> (i32, i32) {
    %c0_i32 = arith.constant 0 : i32
    %c0_i32_0 = arith.constant 0 : i32
    return %arg0, %c0_i32 : i32, i32
  }
}

</mosaic_0001>

<llo_original>
// kernel: tpu_custom_call.1
$region0: #{tpu_custom_call.1}
  #allocation0 [shape = 'u32[]', space=smem, size = 0x4, offset = 0x4, fixed_abs, tag = 'smem constant byte address 0x4 - core index']
  #allocation1 [shape = 'u32[72,128]{1,0:T(1,128)}', space=vmem, size = 0x9000, scoped, tag = 'internal scratch']
  %s0 = inlined_call_operand.hbm [shape: f32[8,32], index: 0, kind: input, shape index: {}]
  %s1 = inlined_call_operand.hbm [shape: f32[32,128], index: 1, kind: input, shape index: {}]
  %s2 = inlined_call_operand.vmem [shape: f32[1,128], index: 2, kind: input, shape index: {}]
  %s3 = inlined_call_operand.hbm [shape: f32[128,128], index: 3, kind: input, shape index: {}]
  %s4 = inlined_call_operand.vmem [shape: f32[1,128], index: 4, kind: input, shape index: {}]
  %s5 = inlined_call_operand.hbm [shape: f32[128,128], index: 5, kind: input, shape index: {}]
  %s6 = inlined_call_operand.vmem [shape: f32[1,128], index: 6, kind: input, shape index: {}]
  %s7 = inlined_call_operand.hbm [shape: f32[8,128], index: 7, kind: output, shape index: {0}]
  %s8 = inlined_call_operand.hbm [shape: f32[8,128], index: 8, kind: output, shape index: {1}]
  %s9 = inlined_call_operand.hbm [shape: f32[8,128], index: 9, kind: output, shape index: {2}]
  %s10 = inlined_call_operand.hbm [shape: f32[8,128], index: 10, kind: output, shape index: {3}]
  %11 = xla_tuple %s7, %s8, %s9, %s10
  %s12 = sld [smem:[#allocation0]]
  $region78: #{tpu_custom_call.1} parent=0
    _
  %s14 = ssub.s32 1, %s12
  %s15 = scalar_select 0, %s14, %s12
  $region1: #{tpu_custom_call.1} parent=0
    #allocation2 [shape = 'u8[4096]{0}', space=vmem, size = 0x1000, scoped, tag = 'input window, operand 0, single buffered']
    #allocation3 [shape = 's32[1]{0}', space=sflag, size = 0x4, scoped, tag = 'scoped memory for tpu_custom_call.1']
    #allocation4 [shape = 's32[1]{0}', space=sflag, size = 0x4, scoped, tag = 'scoped memory for tpu_custom_call.1']
    #allocation5 [shape = 'u8[16384]{0}', space=vmem, size = 0x4000, scoped, tag = 'input window, operand 1, single buffered']
    #allocation6 [shape = 's32[1]{0}', space=sflag, size = 0x4, scoped, tag = 'scoped memory for tpu_custom_call.1']
    #allocation7 [shape = 'u8[65536]{0}', space=vmem, size = 0x10000, scoped, tag = 'input window, operand 3, single buffered']
    #allocation8 [shape = 'u8[65536]{0}', space=vmem, size = 0x10000, scoped, tag = 'input window, operand 5, single buffered']
    #allocation9 [shape = 's32[1]{0}', space=sflag, size = 0x4, scoped, tag = 'scoped memory for tpu_custom_call.1']
    #allocation10 [shape = 'u8[4096]{0}', space=vmem, size = 0x1000, scoped, tag = 'output window, operand 0, single buffered']
    #allocation11 [shape = 'u8[4096]{0}', space=vmem, size = 0x1000, scoped, tag = 'output window, operand 1, single buffered']
    #allocation12 [shape = 's32[1]{0}', space=sflag, size = 0x4, scoped, tag = 'scoped memory for tpu_custom_call.1']
    #allocation13 [shape = 'u8[4096]{0}', space=vmem, size = 0x1000, scoped, tag = 'output window, operand 2, single buffered']
    #allocation14 [shape = 'u8[4096]{0}', space=vmem, size = 0x1000, scoped, tag = 'output window, operand 3, single buffered']
    #allocation15 [shape = 's32[1]{0}', space=sflag, size = 0x4, scoped, tag = 'scoped memory for tpu_custom_call.1']
    %16 = vsyncpa [#allocation3], 0
    %17 = vsyncpa [#allocation6], 0
    %18 = vsyncpa [#allocation9], 0
    %19 = vsyncpa [#allocation4], 0
    %20 = vsyncpa [#allocation12], 0
    %21 = vsyncpa [#allocation15], 0
    // Predicated region
    $region2: #{tpu_custom_call.1} parent=1 // pred_check
      _
    $region3: #{tpu_custom_call.1} parent=1 // pred_check_branch
      %23 = sbr.rel (0) target = $region5
    $region4: #{tpu_custom_call.1} parent=1 // pred_region
      %25 = vsyncadd [#allocation3], 0
      %s27 = sshll.u32 %s0, 4
      %s28 = int_to_ptr.hbm [resolvable:$true] %s27
      %s29 = sshll.u32 [#allocation2], 4
      %s30 = int_to_ptr.vmem [resolvable:$true] %s29
      %32 = dma.hbm_to_vmem [thread:$0]  %s28, 128, %s30, [#allocation3]
    $region5: #{tpu_custom_call.1} parent=1 // pred_fallthru
      _
    // Predicated region
    $region6: #{tpu_custom_call.1} parent=1 // pred_check
      _
    $region7: #{tpu_custom_call.1} parent=1 // pred_check_branch
      %34 = sbr.rel (0) target = $region9
    $region8: #{tpu_custom_call.1} parent=1 // pred_region
      %36 = vsyncadd [#allocation6], 0
      %s37 = sshll.u32 %s1, 4
      %s38 = int_to_ptr.hbm [resolvable:$true] %s37
      %s39 = sshll.u32 [#allocation5], 4
      %s40 = int_to_ptr.vmem [resolvable:$true] %s39
      %45 = dma.hbm_to_vmem [thread:$0]  %s38, 512, %s40, [#allocation6], 128, 128, 8
    $region9: #{tpu_custom_call.1} parent=1 // pred_fallthru
      _
    // Predicated region
    $region10: #{tpu_custom_call.1} parent=1 // pred_check
      _
    $region11: #{tpu_custom_call.1} parent=1 // pred_check_branch
      %47 = sbr.rel (0) target = $region13
    $region12: #{tpu_custom_call.1} parent=1 // pred_region
      _
    $region13: #{tpu_custom_call.1} parent=1 // pred_fallthru
      _
    // Predicated region
    $region14: #{tpu_custom_call.1} parent=1 // pred_check
      _
    $region15: #{tpu_custom_call.1} parent=1 // pred_check_branch
      %49 = sbr.rel (0) target = $region17
    $region16: #{tpu_custom_call.1} parent=1 // pred_region
      %51 = vsyncadd [#allocation6], 0
      %s52 = sshll.u32 %s3, 4
      %s53 = int_to_ptr.hbm [resolvable:$true] %s52
      %s54 = sshll.u32 [#allocation7], 4
      %s55 = int_to_ptr.vmem [resolvable:$true] %s54
      %60 = dma.hbm_to_vmem [thread:$0]  %s53, 2048, %s55, [#allocation6], 128, 128, 8
    $region17: #{tpu_custom_call.1} parent=1 // pred_fallthru
      _
    // Predicated region
    $region18: #{tpu_custom_call.1} parent=1 // pred_check
      _
    $region19: #{tpu_custom_call.1} parent=1 // pred_check_branch
      %62 = sbr.rel (0) target = $region21
    $region20: #{tpu_custom_call.1} parent=1 // pred_region
      _
    $region21: #{tpu_custom_call.1} parent=1 // pred_fallthru
      _
    // Predicated region
    $region22: #{tpu_custom_call.1} parent=1 // pred_check
      _
    $region23: #{tpu_custom_call.1} parent=1 // pred_check_branch
      %64 = sbr.rel (0) target = $region25
    $region24: #{tpu_custom_call.1} parent=1 // pred_region
      %66 = vsyncadd [#allocation9], 0
      %s67 = sshll.u32 %s5, 4
      %s68 = int_to_ptr.hbm [resolvable:$true] %s67
      %s69 = sshll.u32 [#allocation8], 4
      %s70 = int_to_ptr.vmem [resolvable:$true] %s69
      %75 = dma.hbm_to_vmem [thread:$0]  %s68, 2048, %s70, [#allocation9], 128, 128, 8
    $region25: #{tpu_custom_call.1} parent=1 // pred_fallthru
      _
    // Predicated region
    $region26: #{tpu_custom_call.1} parent=1 // pred_check
      _
    $region27: #{tpu_custom_call.1} parent=1 // pred_check_branch
      %77 = sbr.rel (0) target = $region29
    $region28: #{tpu_custom_call.1} parent=1 // pred_region
      _
    $region29: #{tpu_custom_call.1} parent=1 // pred_fallthru
      _
    // Predicated region
    $region30: #{tpu_custom_call.1} parent=1 // pred_check
      _
    $region31: #{tpu_custom_call.1} parent=1 // pred_check_branch
      %79 = sbr.rel (0) target = $region33
    $region32: #{tpu_custom_call.1} parent=1 // pred_region
      %81 = dma.done [#allocation3], 128
    $region33: #{tpu_custom_call.1} parent=1 // pred_fallthru
      _
    // Predicated region
    $region34: #{tpu_custom_call.1} parent=1 // pred_check
      _
    $region35: #{tpu_custom_call.1} parent=1 // pred_check_branch
      %83 = sbr.rel (0) target = $region37
    $region36: #{tpu_custom_call.1} parent=1 // pred_region
      %85 = dma.done [#allocation6], 512
    $region37: #{tpu_custom_call.1} parent=1 // pred_fallthru
      _
    // Predicated region
    $region38: #{tpu_custom_call.1} parent=1 // pred_check
      _
    $region39: #{tpu_custom_call.1} parent=1 // pred_check_branch
      %87 = sbr.rel (0) target = $region41
    $region40: #{tpu_custom_call.1} parent=1 // pred_region
      %89 = dma.done [#allocation6], 2048
    $region41: #{tpu_custom_call.1} parent=1 // pred_fallthru
      _
    // Predicated region
    $region42: #{tpu_custom_call.1} parent=1 // pred_check
      _
    $region43: #{tpu_custom_call.1} parent=1 // pred_check_branch
      %91 = sbr.rel (0) target = $region45
    $region44: #{tpu_custom_call.1} parent=1 // pred_region
      %93 = dma.done [#allocation9], 2048
    $region45: #{tpu_custom_call.1} parent=1 // pred_fallthru
      _
    %v94 = vld [vmem:[#allocation2] sm:$0xff]
    %v95 = vld [vmem:[#allocation5] sm:$0xff]
    %v96 = vld [vmem:[#allocation5 + $0x8] sm:$0xff]
    %v97 = vld [vmem:[#allocation5 + $0x10] sm:$0xff]
    %v98 = vld [vmem:[#allocation5 + $0x18] sm:$0xff]
    %v99 = vld [vmem:[%s2] sm:$0x1]
    %v101 = vperm.slane %v99, 0
    %vm103 = vcmask 261120
    %v105 = vsel %vm103, %v94, 0
    %107 = vmatpush.msra.mxu0 0.0
    %108 = vmatpush.msra.mxu0 0.0
    %109 = vmatpush.msra.mxu0 0.0
    %110 = vmatpush.msra.mxu0 0.0
    %111 = vmatpush.msra.mxu0 0.0
    %112 = vmatpush.msra.mxu0 0.0
    %113 = vmatpush.msra.mxu0 0.0
    %114 = vmatpush.msra.mxu0 0.0
    %115 = vmatpush.msra.mxu0 0.0
    %116 = vmatpush.msra.mxu0 0.0
    %117 = vmatpush.msra.mxu0 0.0
    %118 = vmatpush.msra.mxu0 0.0
    %119 = vmatpush.msra.mxu0 %v98
    %120 = vmatpush.msra.mxu0 %v97
    %121 = vmatpush.msra.mxu0 %v96
    %122 = vmatpush.msra.mxu0 %v95
    %123 = vmatmul.f32.gmra.mxu0 %v105
    %v124 = vpop.f32.mrf.mxu0
    %v125 = vadd.f32 %v101, %v124
    %126 = vdwg.mxu0
    %v127 = vmax.f32 %v125, 0.0
    %128 = vst [vmem:[#allocation10] sm:$0xff] %v127
    %v129 = vld [vmem:[#allocation7] sm:$0xff]
    %v130 = vld [vmem:[#allocation7 + $0x8] sm:$0xff]
    %v131 = vld [vmem:[#allocation7 + $0x10] sm:$0xff]
    %v132 = vld [vmem:[#allocation7 + $0x18] sm:$0xff]
    %v133 = vld [vmem:[#allocation7 + $0x20] sm:$0xff]
    %v134 = vld [vmem:[#allocation7 + $0x28] sm:$0xff]
    %v135 = vld [vmem:[#allocation7 + $0x30] sm:$0xff]
    %v136 = vld [vmem:[#allocation7 + $0x38] sm:$0xff]
    %v137 = vld [vmem:[#allocation7 + $0x40] sm:$0xff]
    %v138 = vld [vmem:[#allocation7 + $0x48] sm:$0xff]
    %v139 = vld [vmem:[#allocation7 + $0x50] sm:$0xff]
    %v140 = vld [vmem:[#allocation7 + $0x58] sm:$0xff]
    %v141 = vld [vmem:[#allocation7 + $0x60] sm:$0xff]
    %v142 = vld [vmem:[#allocation7 + $0x68] sm:$0xff]
    %v143 = vld [vmem:[#allocation7 + $0x70] sm:$0xff]
    %v144 = vld [vmem:[#allocation7 + $0x78] sm:$0xff]
    %v145 = vld [vmem:[%s4] sm:$0x1]
    %v147 = vperm.slane %v145, 0
    %149 = vmatpush.msra.mxu0 %v144
    %150 = vmatpush.msra.mxu0 %v143
    %151 = vmatpush.msra.mxu0 %v142
    %152 = vmatpush.msra.mxu0 %v141
    %153 = vmatpush.msra.mxu0 %v140
    %154 = vmatpush.msra.mxu0 %v139
    %155 = vmatpush.msra.mxu0 %v138
    %156 = vmatpush.msra.mxu0 %v137
    %157 = vmatpush.msra.mxu0 %v136
    %158 = vmatpush.msra.mxu0 %v135
    %159 = vmatpush.msra.mxu0 %v134
    %160 = vmatpush.msra.mxu0 %v133
    %161 = vmatpush.msra.mxu0 %v132
    %162 = vmatpush.msra.mxu0 %v131
    %163 = vmatpush.msra.mxu0 %v130
    %164 = vmatpush.msra.mxu0 %v129
    %165 = vmatmul.f32.gmra.mxu0 %v127
    %v166 = vpop.f32.mrf.mxu0
    %v167 = vadd.f32 %v147, %v166
    %168 = vdwg.mxu0
    %v169 = vmax.f32 %v167, 0.0
    %170 = vst [vmem:[#allocation11] sm:$0xff] %v169
    %v171 = vld [vmem:[#allocation8] sm:$0xff]
    %v172 = vld [vmem:[#allocation8 + $0x8] sm:$0xff]
    %v173 = vld [vmem:[#allocation8 + $0x10] sm:$0xff]
    %v174 = vld [vmem:[#allocation8 + $0x18] sm:$0xff]
    %v175 = vld [vmem:[#allocation8 + $0x20] sm:$0xff]
    %v176 = vld [vmem:[#allocation8 + $0x28] sm:$0xff]
    %v177 = vld [vmem:[#allocation8 + $0x30] sm:$0xff]
    %v178 = vld [vmem:[#allocation8 + $0x38] sm:$0xff]
    %v179 = vld [vmem:[#allocation8 + $0x40] sm:$0xff]
    %v180 = vld [vmem:[#allocation8 + $0x48] sm:$0xff]
    %v181 = vld [vmem:[#allocation8 + $0x50] sm:$0xff]
    %v182 = vld [vmem:[#allocation8 + $0x58] sm:$0xff]
    %v183 = vld [vmem:[#allocation8 + $0x60] sm:$0xff]
    %v184 = vld [vmem:[#allocation8 + $0x68] sm:$0xff]
    %v185 = vld [vmem:[#allocation8 + $0x70] sm:$0xff]
    %v186 = vld [vmem:[#allocation8 + $0x78] sm:$0xff]
    %v187 = vld [vmem:[%s6] sm:$0x1]
    %v189 = vperm.slane %v187, 0
    %191 = vmatpush.msra.mxu0 %v186
    %192 = vmatpush.msra.mxu0 %v185
    %193 = vmatpush.msra.mxu0 %v184
    %194 = vmatpush.msra.mxu0 %v183
    %195 = vmatpush.msra.mxu0 %v182
    %196 = vmatpush.msra.mxu0 %v181
    %197 = vmatpush.msra.mxu0 %v180
    %198 = vmatpush.msra.mxu0 %v179
    %199 = vmatpush.msra.mxu0 %v178
    %200 = vmatpush.msra.mxu0 %v177
    %201 = vmatpush.msra.mxu0 %v176
    %202 = vmatpush.msra.mxu0 %v175
    %203 = vmatpush.msra.mxu0 %v174
    %204 = vmatpush.msra.mxu0 %v173
    %205 = vmatpush.msra.mxu0 %v172
    %206 = vmatpush.msra.mxu0 %v171
    %207 = vmatmul.f32.gmra.mxu0 %v169
    %v208 = vpop.f32.mrf.mxu0
    %v209 = vadd.f32 %v189, %v208
    %210 = vdwg.mxu0
    %211 = vst [vmem:[#allocation13] sm:$0xff] %v209
    %v212 = vxor.u32 %v209, 2147483648
    %v213 = vmul.f32 %v212, 1.442695
    %v214 = vpow.pop %v213
    %v215 = vadd.f32 %v214, 1.0
    %v216 = vrcp.pop %v215
    %v217 = vmul.f32 %v215, %v216
    %v218 = vsub.f32 1.0, %v217
    %v219 = vmul.f32 %v216, %v218
    %v220 = vadd.f32 %v216, %v219
    %vm221 = vweird.f32 %v215
    %vm222 = vweird.f32 %v216
    %vm223 = vmor %vm221, %vm222
    %v224 = vsel %vm223, %v216, %v220
    %v225 = vand.u32 2147483647, %v215
    %vm226 = vcmp.eq.f32.partialorder %v225, 8.507059e+37
    %v227 = vand.u32 %v215, 2147483648
    %v228 = vor.u32 1.1754944e-38, %v227
    %v229 = vsel %vm226, %v228, %v224
    %v230 = vmul.f32 1.0, %v229
    %231 = vst [vmem:[#allocation14] sm:$0xff] %v230
    // Predicated region
    $region46: #{tpu_custom_call.1} parent=1 // pred_check
      _
    $region47: #{tpu_custom_call.1} parent=1 // pred_check_branch
      %233 = sbr.rel (0) target = $region49
    $region48: #{tpu_custom_call.1} parent=1 // pred_region
      %235 = vsyncadd [#allocation4], 0
      %s237 = sshll.u32 [#allocation10], 4
      %s238 = int_to_ptr.vmem [resolvable:$true] %s237
      %s239 = sshll.u32 %s7, 4
      %s240 = int_to_ptr.hbm [resolvable:$true] %s239
      %242 = dma.vmem_to_hbm [thread:$0]  %s238, 128, %s240, [#allocation4]
    $region49: #{tpu_custom_call.1} parent=1 // pred_fallthru
      _
    // Predicated region
    $region50: #{tpu_custom_call.1} parent=1 // pred_check
      _
    $region51: #{tpu_custom_call.1} parent=1 // pred_check_branch
      %244 = sbr.rel (0) target = $region53
    $region52: #{tpu_custom_call.1} parent=1 // pred_region
      %246 = vsyncadd [#allocation12], 0
      %s248 = sshll.u32 [#allocation11], 4
      %s249 = int_to_ptr.vmem [resolvable:$true] %s248
      %s250 = sshll.u32 %s8, 4
      %s251 = int_to_ptr.hbm [resolvable:$true] %s250
      %253 = dma.vmem_to_hbm [thread:$0]  %s249, 128, %s251, [#allocation12]
    $region53: #{tpu_custom_call.1} parent=1 // pred_fallthru
      _
    // Predicated region
    $region54: #{tpu_custom_call.1} parent=1 // pred_check
      _
    $region55: #{tpu_custom_call.1} parent=1 // pred_check_branch
      %255 = sbr.rel (0) target = $region57
    $region56: #{tpu_custom_call.1} parent=1 // pred_region
      %257 = vsyncadd [#allocation12], 0
      %s259 = sshll.u32 [#allocation13], 4
      %s260 = int_to_ptr.vmem [resolvable:$true] %s259
      %s261 = sshll.u32 %s9, 4
      %s262 = int_to_ptr.hbm [resolvable:$true] %s261
      %264 = dma.vmem_to_hbm [thread:$0]  %s260, 128, %s262, [#allocation12]
    $region57: #{tpu_custom_call.1} parent=1 // pred_fallthru
      _
    // Predicated region
    $region58: #{tpu_custom_call.1} parent=1 // pred_check
      _
    $region59: #{tpu_custom_call.1} parent=1 // pred_check_branch
      %266 = sbr.rel (0) target = $region61
    $region60: #{tpu_custom_call.1} parent=1 // pred_region
      %268 = vsyncadd [#allocation15], 0
      %s270 = sshll.u32 [#allocation14], 4
      %s271 = int_to_ptr.vmem [resolvable:$true] %s270
      %s272 = sshll.u32 %s10, 4
      %s273 = int_to_ptr.hbm [resolvable:$true] %s272
      %275 = dma.vmem_to_hbm [thread:$0]  %s271, 128, %s273, [#allocation15]
    $region61: #{tpu_custom_call.1} parent=1 // pred_fallthru
      _
    // Predicated region
    $region62: #{tpu_custom_call.1} parent=1 // pred_check
      _
    $region63: #{tpu_custom_call.1} parent=1 // pred_check_branch
      %277 = sbr.rel (0) target = $region65
    $region64: #{tpu_custom_call.1} parent=1 // pred_region
      %279 = dma.done [#allocation4], 128
    $region65: #{tpu_custom_call.1} parent=1 // pred_fallthru
      _
    // Predicated region
    $region66: #{tpu_custom_call.1} parent=1 // pred_check
      _
    $region67: #{tpu_custom_call.1} parent=1 // pred_check_branch
      %281 = sbr.rel (0) target = $region69
    $region68: #{tpu_custom_call.1} parent=1 // pred_region
      %283 = dma.done [#allocation12], 128
    $region69: #{tpu_custom_call.1} parent=1 // pred_fallthru
      _
    // Predicated region
    $region70: #{tpu_custom_call.1} parent=1 // pred_check
      _
    $region71: #{tpu_custom_call.1} parent=1 // pred_check_branch
      %285 = sbr.rel (0) target = $region73
    $region72: #{tpu_custom_call.1} parent=1 // pred_region
      %287 = dma.done [#allocation12], 128
    $region73: #{tpu_custom_call.1} parent=1 // pred_fallthru
      _
    // Predicated region
    $region74: #{tpu_custom_call.1} parent=1 // pred_check
      _
    $region75: #{tpu_custom_call.1} parent=1 // pred_check_branch
      %289 = sbr.rel (0) target = $region77
    $region76: #{tpu_custom_call.1} parent=1 // pred_region
      %291 = dma.done [#allocation15], 128
    $region77: #{tpu_custom_call.1} parent=1 // pred_fallthru
      _
    %292 = vsyncpa [#allocation3], 1
    %293 = vsyncpa [#allocation6], 1
    %294 = vsyncpa [#allocation9], 1
    %295 = vsyncpa [#allocation4], 1
    %296 = vsyncpa [#allocation12], 1
    %297 = vsyncpa [#allocation15], 1

</llo_original>
